<compile_context>
chip_gen: v7x
topology: tpu7x:2x2x1
jax: 0.10.0
libtpu: 0.0.40
codegen_flags: <defaults>
</compile_context>

<pallas_src>
import jax
import jax.numpy as jnp
from jax import lax
from jax.experimental import pallas as pl
from jax.experimental.pallas import tpu as pltpu


def _round_up(x, m):
    return ((x + m - 1) // m) * m


# Conservative VMEM budgets that hold on every generation (v7x has 64 MiB
# physical VMEM per TensorCore; keep data + headroom well under that).
_VMEM_DATA_BUDGET = 40 << 20   # target footprint: double-buffered tiles + out
_VMEM_LIMIT_BYTES = 48 << 20   # compiler limit (raised above scoped defaults)


def _choose_tiles(K, O, n_rows):
    """Pick (t_o, t_k, K_pad) tile sizes from the VMEM budget."""
    # O tile: 256 matches the v7x 2x256^2 MXU and gives the 2 TensorCores
    # independent weight streams; fall back to full O when it is small.
    if O >= 512 and O % 256 == 0:
        t_o = 256
    elif O >= 256 and O % 128 == 0:
        t_o = 128
    else:
        t_o = O

    # K tile: single shot if the whole reduction fits the budget (fewer grid
    # steps -> less per-step overhead), else the largest multiple of 512.
    bytes_per_k = 2 * (n_rows + t_o) * 4          # double-buffered x & w tiles
    fixed = (n_rows * t_o + t_o) * 4              # resident out block + bias
    t_k_max = max(512, (_VMEM_DATA_BUDGET - fixed) // max(bytes_per_k, 1))
    k128 = _round_up(K, 128)
    if k128 <= t_k_max:
        t_k = k128
    else:
        t_k = max(512, (t_k_max // 512) * 512)
    K_pad = _round_up(K, t_k)
    return t_o, t_k, K_pad


def prepare_ln_params(weight, bias, batch_hint=8):
    """One-time parameter prep (init time, NOT the per-call forward path).

    weight: (O, C, H, W) float32 Conv2d weight with kernel_size == (H, W)
    bias:   (O,)         float32
    Returns (w_ko, b_row, t_k, t_o):
      w_ko:  (K_pad, O) weight, transposed + zero-padded along K once.
      b_row: (1, O) bias row.
    """
    O = weight.shape[0]
    K = 1
    for d in weight.shape[1:]:
        K *= d
    t_o, t_k, K_pad = _choose_tiles(K, O, n_rows=max(8, batch_hint))

    w_ko = jnp.asarray(weight).reshape(O, K).T            # (K, O), once at init
    if K_pad > K:
        w_ko = jnp.pad(w_ko, ((0, K_pad - K), (0, 0)))    # once at init
    b_row = jnp.asarray(bias).reshape(1, O)
    return w_ko, b_row, t_k, t_o


def _ln_kernel(x_ref, w_ref, b_ref, o_ref):
    # x_ref: (N, t_k)     flattened-input tile
    # w_ref: (t_k, t_o)   weight tile, canonical (K, O) orientation
    # b_ref: (1, t_o)     bias row for this O block
    # o_ref: (N, t_o)     f32 output block, resident across the K axis
    @pl.when(pl.program_id(1) == 0)
    def _():
        o_ref[...] = jnp.broadcast_to(b_ref[...], o_ref.shape)

    o_ref[...] += lax.dot_general(
        x_ref[...],
        w_ref[...],
        dimension_numbers=(((1,), (0,)), ((), ())),
        preferred_element_type=jnp.float32,
    )


def ln_layer_forward(x, params):
    """Forward pass of LNLayer.

    x:      (N, C, H, W) float32
    params: output of prepare_ln_params(weight, bias)
    returns (N, O, 1, 1) float32
    """
    w_ko, b_row, t_k, t_o = params
    K_pad, O = w_ko.shape
    N = x.shape[0]

    x2 = x.reshape(N, -1)
    K = x2.shape[1]
    if K_pad > K:
        # Tiny (N rows only) — the weight itself is never padded per call.
        x2 = jnp.pad(x2, ((0, 0), (0, K_pad - K)))

    n_o = O // t_o
    n_k = K_pad // t_k

    itemsize = 4
    cost = pl.CostEstimate(
        flops=2 * N * K_pad * O,
        transcendentals=0,
        bytes_accessed=(N * K_pad + K_pad * O + O + N * O) * itemsize,
    )

    out = pl.pallas_call(
        _ln_kernel,
        out_shape=jax.ShapeDtypeStruct((N, O), jnp.float32),
        grid_spec=pltpu.PrefetchScalarGridSpec(
            num_scalar_prefetch=0,
            grid=(n_o, n_k),  # (parallel over O blocks, reduction over K)
            in_specs=[
                pl.BlockSpec((N, t_k), lambda j, k: (0, k)),
                pl.BlockSpec((t_k, t_o), lambda j, k: (k, j)),
                pl.BlockSpec((1, t_o), lambda j, k: (0, j)),
            ],
            out_specs=pl.BlockSpec((N, t_o), lambda j, k: (0, j)),
        ),
        compiler_params=pltpu.CompilerParams(
            dimension_semantics=("parallel", "arbitrary"),
            vmem_limit_bytes=_VMEM_LIMIT_BYTES,
        ),
        cost_estimate=cost,
    )(x2, w_ko, b_row)

    return out.reshape(N, O, 1, 1)


if __name__ == "__main__":
    # Small shapes consistent with the module:
    #   batch=2, num_of_channels=4, input_shape=(16, 16), num_of_neurons=32
    N, C, H, W = 2, 4, 16, 16
    num_of_neurons = 32

    key = jax.random.PRNGKey(0)
    kx, kw, kb = jax.random.split(key, 3)

    x = jax.random.normal(kx, (N, C, H, W), dtype=jnp.float32)

    # Deterministic parameter init (mimics Conv2d-style uniform scaling).
    fan_in = C * H * W
    bound = 1.0 / (float(fan_in) ** 0.5)
    weight = jax.random.uniform(
        kw, (num_of_neurons, C, H, W), dtype=jnp.float32, minval=-bound, maxval=bound
    )
    bias = jax.random.uniform(
        kb, (num_of_neurons,), dtype=jnp.float32, minval=-bound, maxval=bound
    )

    # One-time parameter prep (hoisted out of the forward path).
    params = prepare_ln_params(weight, bias, batch_hint=N)

    y = ln_layer_forward(x, params)
    jax.block_until_ready(y)

    # Sanity check against a pure-JAX reference of the same math.
    ref = (x.reshape(N, -1) @ weight.reshape(num_of_neurons, -1).T + bias).reshape(
        N, num_of_neurons, 1, 1
    )
    assert y.shape == (N, num_of_neurons, 1, 1)
    assert jnp.allclose(y, ref, atol=1e-5, rtol=1e-5)

    print("KERNEL_OK")
</pallas_src>

<mosaic_0001>
module attributes {stable_mosaic.version = 11 : i64} {
  func.func @_ln_kernel(%arg0: i32, %arg1: i32, %arg2: memref<2x1024xf32, #tpu.memory_space<vmem>>, %arg3: memref<1024x32xf32, #tpu.memory_space<vmem>>, %arg4: memref<1x32xf32, #tpu.memory_space<vmem>>, %arg5: memref<2x32xf32, #tpu.memory_space<vmem>>) attributes {dimension_semantics = [#tpu.dimension_semantics<parallel>, #tpu.dimension_semantics<arbitrary>], iteration_bounds = array<i64: 1, 1>, scalar_prefetch = 0 : i64, scratch_operands = 0 : i64, tpu.core_type = #tpu.core_type<tc>, window_params = [{transform_indices = @transform_0, window_bounds = array<i64: 2, 1024>}, {transform_indices = @transform_1, window_bounds = array<i64: 1024, 32>}, {transform_indices = @transform_2, window_bounds = array<i64: 1, 32>}, {transform_indices = @transform_3, window_bounds = array<i64: 2, 32>}]} {
    %c0_i32 = arith.constant 0 : i32
    %0 = arith.cmpi eq, %arg1, %c0_i32 : i32
    %1 = arith.extui %0 : i1 to i32
    %c0_i32_0 = arith.constant 0 : i32
    %2 = arith.cmpi ne, %1, %c0_i32_0 : i32
    scf.if %2 {
      %c0_8 = arith.constant 0 : index
      %c0_9 = arith.constant 0 : index
      %9 = vector.load %arg4[%c0_8, %c0_9] : memref<1x32xf32, #tpu.memory_space<vmem>>, vector<1x32xf32>
      %10 = vector.shape_cast %9 : vector<1x32xf32> to vector<1x32xf32>
      %11 = vector.broadcast %10 : vector<1x32xf32> to vector<2x32xf32>
      %c0_10 = arith.constant 0 : index
      %c0_11 = arith.constant 0 : index
      %12 = vector.load %arg5[%c0_10, %c0_11] : memref<2x32xf32, #tpu.memory_space<vmem>>, vector<2x32xf32>
      tpu.vector_store %arg5[%c0_10, %c0_11], %11 {strides = array<i32>} : memref<2x32xf32, #tpu.memory_space<vmem>>, vector<2x32xf32>,
    } else {
    }
    %c0 = arith.constant 0 : index
    %c0_1 = arith.constant 0 : index
    %3 = vector.load %arg5[%c0, %c0_1] : memref<2x32xf32, #tpu.memory_space<vmem>>, vector<2x32xf32>
    %c0_2 = arith.constant 0 : index
    %c0_3 = arith.constant 0 : index
    %4 = vector.load %arg2[%c0_2, %c0_3] : memref<2x1024xf32, #tpu.memory_space<vmem>>, vector<2x1024xf32>
    %c0_4 = arith.constant 0 : index
    %c0_5 = arith.constant 0 : index
    %5 = vector.load %arg3[%c0_4, %c0_5] : memref<1024x32xf32, #tpu.memory_space<vmem>>, vector<1024x32xf32>
    %cst = arith.constant dense<0.000000e+00> : vector<2x32xf32>
    %6 = tpu.matmul %4, %5, %cst {dimension_numbers = #tpu.dot_dimension_numbers<[1], [0], [0], [1], [0, 0, 1, 1], [], []>} : vector<2x1024xf32>, vector<1024x32xf32>, vector<2x32xf32> -> vector<2x32xf32>
    %7 = arith.addf %3, %6 : vector<2x32xf32>
    %c0_6 = arith.constant 0 : index
    %c0_7 = arith.constant 0 : index
    %8 = vector.load %arg5[%c0_6, %c0_7] : memref<2x32xf32, #tpu.memory_space<vmem>>, vector<2x32xf32>
    tpu.vector_store %arg5[%c0_6, %c0_7], %7 {strides = array<i32>} : memref<2x32xf32, #tpu.memory_space<vmem>>, vector<2x32xf32>,
    return
  }
  func.func @transform_0(%arg0: i32, %arg1: i32) -> (i32, i32) {
    %c0_i32 = arith.constant 0 : i32
    %c0_i32_0 = arith.constant 0 : i32
    return %c0_i32, %arg1 : i32, i32
  }
  func.func @transform_1(%arg0: i32, %arg1: i32) -> (i32, i32) {
    %c0_i32 = arith.constant 0 : i32
    return %arg1, %arg0 : i32, i32
  }
  func.func @transform_2(%arg0: i32, %arg1: i32) -> (i32, i32) {
    %c0_i32 = arith.constant 0 : i32
    %c0_i32_0 = arith.constant 0 : i32
    return %c0_i32, %arg0 : i32, i32
  }
  func.func @transform_3(%arg0: i32, %arg1: i32) -> (i32, i32) {
    %c0_i32 = arith.constant 0 : i32
    %c0_i32_0 = arith.constant 0 : i32
    return %c0_i32, %arg0 : i32, i32
  }
}

</mosaic_0001>

<llo_original>
// kernel: tpu_custom_call.1
$region0: #{tpu_custom_call.1}
  #allocation0 [shape = 'u32[]', space=smem, size = 0x4, offset = 0x4, fixed_abs, tag = 'smem constant byte address 0x4 - core index']
  #allocation1 [shape = 'u32[144,128]{1,0:T(1,128)}', space=vmem, size = 0x12000, scoped, tag = 'internal scratch']
  %s0 = inlined_call_operand.vmem [shape: f32[2,1024], index: 0, kind: input, shape index: {}]
  %s1 = inlined_call_operand.vmem [shape: f32[1024,32], index: 1, kind: input, shape index: {}]
  %s2 = inlined_call_operand.vmem [shape: f32[1,32], index: 2, kind: input, shape index: {}]
  %s3 = inlined_call_operand.hbm [shape: f32[2,32], index: 3, kind: output, shape index: {}]
  %s4 = sld [smem:[#allocation0]]
  $region26: #{tpu_custom_call.1} parent=0
    _
  %s6 = ssub.s32 1, %s4
  %s7 = scalar_select 0, %s6, %s4
  $region1: #{tpu_custom_call.1} parent=0
    #allocation2 [shape = 'u8[1024]{0}', space=vmem, size = 0x400, scoped, tag = 'output window, operand 0, single buffered']
    #allocation3 [shape = 's32[1]{0}', space=sflag, size = 0x4, scoped, tag = 'scoped memory for tpu_custom_call.1']
    %8 = vsyncpa [#allocation3], 0
    // Predicated region
    $region2: #{tpu_custom_call.1} parent=1 // pred_check
      _
    $region3: #{tpu_custom_call.1} parent=1 // pred_check_branch
      %10 = sbr.rel (0) target = $region5
    $region4: #{tpu_custom_call.1} parent=1 // pred_region
      _
    $region5: #{tpu_custom_call.1} parent=1 // pred_fallthru
      _
    // Predicated region
    $region6: #{tpu_custom_call.1} parent=1 // pred_check
      _
    $region7: #{tpu_custom_call.1} parent=1 // pred_check_branch
      %12 = sbr.rel (0) target = $region9
    $region8: #{tpu_custom_call.1} parent=1 // pred_region
      _
    $region9: #{tpu_custom_call.1} parent=1 // pred_fallthru
      _
    // Predicated region
    $region10: #{tpu_custom_call.1} parent=1 // pred_check
      _
    $region11: #{tpu_custom_call.1} parent=1 // pred_check_branch
      %14 = sbr.rel (0) target = $region13
    $region12: #{tpu_custom_call.1} parent=1 // pred_region
      _
    $region13: #{tpu_custom_call.1} parent=1 // pred_fallthru
      _
    %p15 = scmp.eq.s32.totalorder 0, 0
    // Predicated region
    $region14: #{tpu_custom_call.1} parent=1 // pred_check
      %p16 = pneg %p15
    $region15: #{tpu_custom_call.1} parent=1 // pred_check_branch
      %18 = sbr.rel (%p16) target = $region17
    $region16: #{tpu_custom_call.1} parent=1 // pred_region
      %v19 = vld [vmem:[%s2] sm:$0x1]
      %v21 = vlaneseq
      %v22 = vshrl.u32 %v21, 7
      %v23 = vsub.s32 0, %v22
      %v24 = vrot.slane %v19, %v23
      %vm26 = vcmask 254976
      %27 = vst.msk [vmem:[#allocation2] sm:$0x3] %vm26, %v24
    $region17: #{tpu_custom_call.1} parent=1 // pred_fallthru
      _
    %v28 = vld [vmem:[#allocation2] sm:$0x3]
    %v29 = vld [vmem:[%s0] sm:$0xff]
    %v30 = vld [vmem:[%s0 + $0x8] sm:$0xff]
    %v31 = vld [vmem:[%s1] sm:$0xff]
    %v32 = vld [vmem:[%s1 + $0x8] sm:$0xff]
    %v33 = vld [vmem:[%s1 + $0x10] sm:$0xff]
    %v34 = vld [vmem:[%s1 + $0x18] sm:$0xff]
    %v35 = vld [vmem:[%s1 + $0x20] sm:$0xff]
    %v36 = vld [vmem:[%s1 + $0x28] sm:$0xff]
    %v37 = vld [vmem:[%s1 + $0x30] sm:$0xff]
    %v38 = vld [vmem:[%s1 + $0x38] sm:$0xff]
    %v39 = vld [vmem:[%s1 + $0x40] sm:$0xff]
    %v40 = vld [vmem:[%s1 + $0x48] sm:$0xff]
    %v41 = vld [vmem:[%s1 + $0x50] sm:$0xff]
    %v42 = vld [vmem:[%s1 + $0x58] sm:$0xff]
    %v43 = vld [vmem:[%s1 + $0x60] sm:$0xff]
    %v44 = vld [vmem:[%s1 + $0x68] sm:$0xff]
    %v45 = vld [vmem:[%s1 + $0x70] sm:$0xff]
    %v46 = vld [vmem:[%s1 + $0x78] sm:$0xff]
    %v47 = vld [vmem:[%s1 + $0x80] sm:$0xff]
    %v48 = vld [vmem:[%s1 + $0x88] sm:$0xff]
    %v49 = vld [vmem:[%s1 + $0x90] sm:$0xff]
    %v50 = vld [vmem:[%s1 + $0x98] sm:$0xff]
    %v51 = vld [vmem:[%s1 + $0xa0] sm:$0xff]
    %v52 = vld [vmem:[%s1 + $0xa8] sm:$0xff]
    %v53 = vld [vmem:[%s1 + $0xb0] sm:$0xff]
    %v54 = vld [vmem:[%s1 + $0xb8] sm:$0xff]
    %v55 = vld [vmem:[%s1 + $0xc0] sm:$0xff]
    %v56 = vld [vmem:[%s1 + $0xc8] sm:$0xff]
    %v57 = vld [vmem:[%s1 + $0xd0] sm:$0xff]
    %v58 = vld [vmem:[%s1 + $0xd8] sm:$0xff]
    %v59 = vld [vmem:[%s1 + $0xe0] sm:$0xff]
    %v60 = vld [vmem:[%s1 + $0xe8] sm:$0xff]
    %v61 = vld [vmem:[%s1 + $0xf0] sm:$0xff]
    %v62 = vld [vmem:[%s1 + $0xf8] sm:$0xff]
    %v63 = vld [vmem:[%s1 + $0x100] sm:$0xff]
    %v64 = vld [vmem:[%s1 + $0x108] sm:$0xff]
    %v65 = vld [vmem:[%s1 + $0x110] sm:$0xff]
    %v66 = vld [vmem:[%s1 + $0x118] sm:$0xff]
    %v67 = vld [vmem:[%s1 + $0x120] sm:$0xff]
    %v68 = vld [vmem:[%s1 + $0x128] sm:$0xff]
    %v69 = vld [vmem:[%s1 + $0x130] sm:$0xff]
    %v70 = vld [vmem:[%s1 + $0x138] sm:$0xff]
    %v71 = vld [vmem:[%s1 + $0x140] sm:$0xff]
    %v72 = vld [vmem:[%s1 + $0x148] sm:$0xff]
    %v73 = vld [vmem:[%s1 + $0x150] sm:$0xff]
    %v74 = vld [vmem:[%s1 + $0x158] sm:$0xff]
    %v75 = vld [vmem:[%s1 + $0x160] sm:$0xff]
    %v76 = vld [vmem:[%s1 + $0x168] sm:$0xff]
    %v77 = vld [vmem:[%s1 + $0x170] sm:$0xff]
    %v78 = vld [vmem:[%s1 + $0x178] sm:$0xff]
    %v79 = vld [vmem:[%s1 + $0x180] sm:$0xff]
    %v80 = vld [vmem:[%s1 + $0x188] sm:$0xff]
    %v81 = vld [vmem:[%s1 + $0x190] sm:$0xff]
    %v82 = vld [vmem:[%s1 + $0x198] sm:$0xff]
    %v83 = vld [vmem:[%s1 + $0x1a0] sm:$0xff]
    %v84 = vld [vmem:[%s1 + $0x1a8] sm:$0xff]
    %v85 = vld [vmem:[%s1 + $0x1b0] sm:$0xff]
    %v86 = vld [vmem:[%s1 + $0x1b8] sm:$0xff]
    %v87 = vld [vmem:[%s1 + $0x1c0] sm:$0xff]
    %v88 = vld [vmem:[%s1 + $0x1c8] sm:$0xff]
    %v89 = vld [vmem:[%s1 + $0x1d0] sm:$0xff]
    %v90 = vld [vmem:[%s1 + $0x1d8] sm:$0xff]
    %v91 = vld [vmem:[%s1 + $0x1e0] sm:$0xff]
    %v92 = vld [vmem:[%s1 + $0x1e8] sm:$0xff]
    %v93 = vld [vmem:[%s1 + $0x1f0] sm:$0xff]
    %v94 = vld [vmem:[%s1 + $0x1f8] sm:$0xff]
    %v95 = vld [vmem:[%s1 + $0x200] sm:$0xff]
    %v96 = vld [vmem:[%s1 + $0x208] sm:$0xff]
    %v97 = vld [vmem:[%s1 + $0x210] sm:$0xff]
    %v98 = vld [vmem:[%s1 + $0x218] sm:$0xff]
    %v99 = vld [vmem:[%s1 + $0x220] sm:$0xff]
    %v100 = vld [vmem:[%s1 + $0x228] sm:$0xff]
    %v101 = vld [vmem:[%s1 + $0x230] sm:$0xff]
    %v102 = vld [vmem:[%s1 + $0x238] sm:$0xff]
    %v103 = vld [vmem:[%s1 + $0x240] sm:$0xff]
    %v104 = vld [vmem:[%s1 + $0x248] sm:$0xff]
    %v105 = vld [vmem:[%s1 + $0x250] sm:$0xff]
    %v106 = vld [vmem:[%s1 + $0x258] sm:$0xff]
    %v107 = vld [vmem:[%s1 + $0x260] sm:$0xff]
    %v108 = vld [vmem:[%s1 + $0x268] sm:$0xff]
    %v109 = vld [vmem:[%s1 + $0x270] sm:$0xff]
    %v110 = vld [vmem:[%s1 + $0x278] sm:$0xff]
    %v111 = vld [vmem:[%s1 + $0x280] sm:$0xff]
    %v112 = vld [vmem:[%s1 + $0x288] sm:$0xff]
    %v113 = vld [vmem:[%s1 + $0x290] sm:$0xff]
    %v114 = vld [vmem:[%s1 + $0x298] sm:$0xff]
    %v115 = vld [vmem:[%s1 + $0x2a0] sm:$0xff]
    %v116 = vld [vmem:[%s1 + $0x2a8] sm:$0xff]
    %v117 = vld [vmem:[%s1 + $0x2b0] sm:$0xff]
    %v118 = vld [vmem:[%s1 + $0x2b8] sm:$0xff]
    %v119 = vld [vmem:[%s1 + $0x2c0] sm:$0xff]
    %v120 = vld [vmem:[%s1 + $0x2c8] sm:$0xff]
    %v121 = vld [vmem:[%s1 + $0x2d0] sm:$0xff]
    %v122 = vld [vmem:[%s1 + $0x2d8] sm:$0xff]
    %v123 = vld [vmem:[%s1 + $0x2e0] sm:$0xff]
    %v124 = vld [vmem:[%s1 + $0x2e8] sm:$0xff]
    %v125 = vld [vmem:[%s1 + $0x2f0] sm:$0xff]
    %v126 = vld [vmem:[%s1 + $0x2f8] sm:$0xff]
    %v127 = vld [vmem:[%s1 + $0x300] sm:$0xff]
    %v128 = vld [vmem:[%s1 + $0x308] sm:$0xff]
    %v129 = vld [vmem:[%s1 + $0x310] sm:$0xff]
    %v130 = vld [vmem:[%s1 + $0x318] sm:$0xff]
    %v131 = vld [vmem:[%s1 + $0x320] sm:$0xff]
    %v132 = vld [vmem:[%s1 + $0x328] sm:$0xff]
    %v133 = vld [vmem:[%s1 + $0x330] sm:$0xff]
    %v134 = vld [vmem:[%s1 + $0x338] sm:$0xff]
    %v135 = vld [vmem:[%s1 + $0x340] sm:$0xff]
    %v136 = vld [vmem:[%s1 + $0x348] sm:$0xff]
    %v137 = vld [vmem:[%s1 + $0x350] sm:$0xff]
    %v138 = vld [vmem:[%s1 + $0x358] sm:$0xff]
    %v139 = vld [vmem:[%s1 + $0x360] sm:$0xff]
    %v140 = vld [vmem:[%s1 + $0x368] sm:$0xff]
    %v141 = vld [vmem:[%s1 + $0x370] sm:$0xff]
    %v142 = vld [vmem:[%s1 + $0x378] sm:$0xff]
    %v143 = vld [vmem:[%s1 + $0x380] sm:$0xff]
    %v144 = vld [vmem:[%s1 + $0x388] sm:$0xff]
    %v145 = vld [vmem:[%s1 + $0x390] sm:$0xff]
    %v146 = vld [vmem:[%s1 + $0x398] sm:$0xff]
    %v147 = vld [vmem:[%s1 + $0x3a0] sm:$0xff]
    %v148 = vld [vmem:[%s1 + $0x3a8] sm:$0xff]
    %v149 = vld [vmem:[%s1 + $0x3b0] sm:$0xff]
    %v150 = vld [vmem:[%s1 + $0x3b8] sm:$0xff]
    %v151 = vld [vmem:[%s1 + $0x3c0] sm:$0xff]
    %v152 = vld [vmem:[%s1 + $0x3c8] sm:$0xff]
    %v153 = vld [vmem:[%s1 + $0x3d0] sm:$0xff]
    %v154 = vld [vmem:[%s1 + $0x3d8] sm:$0xff]
    %v155 = vld [vmem:[%s1 + $0x3e0] sm:$0xff]
    %v156 = vld [vmem:[%s1 + $0x3e8] sm:$0xff]
    %v157 = vld [vmem:[%s1 + $0x3f0] sm:$0xff]
    %v158 = vld [vmem:[%s1 + $0x3f8] sm:$0xff]
    %v161 = vcombine.high %v29, %v29
    %v163 = vunpack.c.l.s4 1983009808
    %v164 = vunpack.c.0.s8 %v163
    %v165 = vlaneseq
    %v166 = vshrl.u32 %v165, 7
    %v167 = vsub.s32 %v164, %v166
    %v168 = vrot.slane %v29, %v167
    %v170 = vunpack.c.l.s4 1983009808
    %v171 = vunpack.c.0.s8 %v170
    %v172 = vlaneseq
    %v173 = vshrl.u32 %v172, 7
    %v174 = vsub.s32 %v171, %v173
    %v175 = vrot.slane %v161, %v174
    %v176 = vcombine.high %v168, %v168
    %v177 = vcombine.high %v175, %v175
    %v178 = vcombine.high %v30, %v30
    %v180 = vunpack.c.l.s4 1983009808
    %v181 = vunpack.c.0.s8 %v180
    %v182 = vlaneseq
    %v183 = vshrl.u32 %v182, 7
    %v184 = vsub.s32 %v181, %v183
    %v185 = vrot.slane %v30, %v184
    %v187 = vunpack.c.l.s4 1983009808
    %v188 = vunpack.c.0.s8 %v187
    %v189 = vlaneseq
    %v190 = vshrl.u32 %v189, 7
    %v191 = vsub.s32 %v188, %v190
    %v192 = vrot.slane %v178, %v191
    %v193 = vcombine.high %v185, %v185
    %v194 = vcombine.high %v192, %v192
    %203 = vmatprep.subr.mxu0 0.0
    %204 = vmatpush1.msra.mxu0 %v31
    %205 = vmatprep.subr.mxu0 0.0
    %206 = vmatpush1.msra.mxu0 %v32
    %207 = vmatprep.subr.mxu0 0.0
    %208 = vmatpush1.msra.mxu0 %v33
    %209 = vmatprep.subr.mxu0 0.0
    %210 = vmatpush1.msra.mxu0 %v34
    %211 = vmatprep.subr.mxu0 0.0
    %212 = vmatpush1.msra.mxu0 %v35
    %213 = vmatprep.subr.mxu0 0.0
    %214 = vmatpush1.msra.mxu0 %v36
    %215 = vmatprep.subr.mxu0 0.0
    %216 = vmatpush1.msra.mxu0 %v37
    %217 = vmatprep.subr.mxu0 0.0
    %218 = vmatpush1.msra.mxu0 %v38
    %219 = vmatprep.subr.mxu0 0.0
    %220 = vmatpush1.msra.mxu0 %v39
    %221 = vmatprep.subr.mxu0 0.0
    %222 = vmatpush1.msra.mxu0 %v40
    %223 = vmatprep.subr.mxu0 0.0
    %224 = vmatpush1.msra.mxu0 %v41
    %225 = vmatprep.subr.mxu0 0.0
    %226 = vmatpush1.msra.mxu0 %v42
    %227 = vmatprep.subr.mxu0 0.0
    %228 = vmatpush1.msra.mxu0 %v43
    %229 = vmatprep.subr.mxu0 0.0
    %230 = vmatpush1.msra.mxu0 %v44
    %231 = vmatprep.subr.mxu0 0.0
    %232 = vmatpush1.msra.mxu0 %v45
    %233 = vmatprep.subr.mxu0 0.0
    %234 = vmatpush1.msra.mxu0 %v46
    %235 = vmatprep.subr.mxu0 0.0
    %236 = vmatpush1.msra.mxu0 %v47
    %237 = vmatprep.subr.mxu0 0.0
    %238 = vmatpush1.msra.mxu0 %v48
    %239 = vmatprep.subr.mxu0 0.0
    %240 = vmatpush1.msra.mxu0 %v49
    %241 = vmatprep.subr.mxu0 0.0
    %242 = vmatpush1.msra.mxu0 %v50
    %243 = vmatprep.subr.mxu0 0.0
    %244 = vmatpush1.msra.mxu0 %v51
    %245 = vmatprep.subr.mxu0 0.0
    %246 = vmatpush1.msra.mxu0 %v52
    %247 = vmatprep.subr.mxu0 0.0
    %248 = vmatpush1.msra.mxu0 %v53
    %249 = vmatprep.subr.mxu0 0.0
    %250 = vmatpush1.msra.mxu0 %v54
    %251 = vmatprep.subr.mxu0 0.0
    %252 = vmatpush1.msra.mxu0 %v55
    %253 = vmatprep.subr.mxu0 0.0
    %254 = vmatpush1.msra.mxu0 %v56
    %255 = vmatprep.subr.mxu0 0.0
    %256 = vmatpush1.msra.mxu0 %v57
    %257 = vmatprep.subr.mxu0 0.0
    %258 = vmatpush1.msra.mxu0 %v58
    %259 = vmatprep.subr.mxu0 0.0
    %260 = vmatpush1.msra.mxu0 %v59
    %261 = vmatprep.subr.mxu0 0.0
    %262 = vmatpush1.msra.mxu0 %v60
    %263 = vmatprep.subr.mxu0 0.0
    %264 = vmatpush1.msra.mxu0 %v61
    %265 = vmatprep.subr.mxu0 0.0
    %266 = vmatpush1.msra.mxu0 %v62
    %267 = vmatprep.mubr.f32.mxu0 %v176
    %268 = vmatmul.mubr.f32.gmra.mrb[0].mxu0 %v168
    %v269 = vpop.f32.mrb[0].mxu0
    %v270 = vadd.f32 0.0, %v269
    %v271 = vpop.f32.mrb[0].mxu0
    %272 = vdwg.mxu0
    %273 = vmatprep.subr.mxu0 0.0
    %274 = vmatpush1.msra.mxu0 %v63
    %275 = vmatprep.subr.mxu0 0.0
    %276 = vmatpush1.msra.mxu0 %v64
    %277 = vmatprep.subr.mxu0 0.0
    %278 = vmatpush1.msra.mxu0 %v65
    %279 = vmatprep.subr.mxu0 0.0
    %280 = vmatpush1.msra.mxu0 %v66
    %281 = vmatprep.subr.mxu0 0.0
    %282 = vmatpush1.msra.mxu0 %v67
    %283 = vmatprep.subr.mxu0 0.0
    %284 = vmatpush1.msra.mxu0 %v68
    %285 = vmatprep.subr.mxu0 0.0
    %286 = vmatpush1.msra.mxu0 %v69
    %287 = vmatprep.subr.mxu0 0.0
    %288 = vmatpush1.msra.mxu0 %v70
    %289 = vmatprep.subr.mxu0 0.0
    %290 = vmatpush1.msra.mxu0 %v71
    %291 = vmatprep.subr.mxu0 0.0
    %292 = vmatpush1.msra.mxu0 %v72
    %293 = vmatprep.subr.mxu0 0.0
    %294 = vmatpush1.msra.mxu0 %v73
    %295 = vmatprep.subr.mxu0 0.0
    %296 = vmatpush1.msra.mxu0 %v74
    %297 = vmatprep.subr.mxu0 0.0
    %298 = vmatpush1.msra.mxu0 %v75
    %299 = vmatprep.subr.mxu0 0.0
    %300 = vmatpush1.msra.mxu0 %v76
    %301 = vmatprep.subr.mxu0 0.0
    %302 = vmatpush1.msra.mxu0 %v77
    %303 = vmatprep.subr.mxu0 0.0
    %304 = vmatpush1.msra.mxu0 %v78
    %305 = vmatprep.subr.mxu0 0.0
    %306 = vmatpush1.msra.mxu0 %v79
    %307 = vmatprep.subr.mxu0 0.0
    %308 = vmatpush1.msra.mxu0 %v80
    %309 = vmatprep.subr.mxu0 0.0
    %310 = vmatpush1.msra.mxu0 %v81
    %311 = vmatprep.subr.mxu0 0.0
    %312 = vmatpush1.msra.mxu0 %v82
    %313 = vmatprep.subr.mxu0 0.0
    %314 = vmatpush1.msra.mxu0 %v83
    %315 = vmatprep.subr.mxu0 0.0
    %316 = vmatpush1.msra.mxu0 %v84
    %317 = vmatprep.subr.mxu0 0.0
    %318 = vmatpush1.msra.mxu0 %v85
    %319 = vmatprep.subr.mxu0 0.0
    %320 = vmatpush1.msra.mxu0 %v86
    %321 = vmatprep.subr.mxu0 0.0
    %322 = vmatpush1.msra.mxu0 %v87
    %323 = vmatprep.subr.mxu0 0.0
    %324 = vmatpush1.msra.mxu0 %v88
    %325 = vmatprep.subr.mxu0 0.0
    %326 = vmatpush1.msra.mxu0 %v89
    %327 = vmatprep.subr.mxu0 0.0
    %328 = vmatpush1.msra.mxu0 %v90
    %329 = vmatprep.subr.mxu0 0.0
    %330 = vmatpush1.msra.mxu0 %v91
    %331 = vmatprep.subr.mxu0 0.0
    %332 = vmatpush1.msra.mxu0 %v92
    %333 = vmatprep.subr.mxu0 0.0
    %334 = vmatpush1.msra.mxu0 %v93
    %335 = vmatprep.subr.mxu0 0.0
    %336 = vmatpush1.msra.mxu0 %v94
    %337 = vmatprep.mubr.f32.mxu0 %v177
    %338 = vmatmul.mubr.f32.gmra.mrb[0].mxu0 %v175
    %v339 = vpop.f32.mrb[0].mxu0
    %v340 = vadd.f32 %v270, %v339
    %v341 = vpop.f32.mrb[0].mxu0
    %342 = vdwg.mxu0
    %343 = vmatprep.subr.mxu0 0.0
    %344 = vmatpush1.msra.mxu0 %v95
    %345 = vmatprep.subr.mxu0 0.0
    %346 = vmatpush1.msra.mxu0 %v96
    %347 = vmatprep.subr.mxu0 0.0
    %348 = vmatpush1.msra.mxu0 %v97
    %349 = vmatprep.subr.mxu0 0.0
    %350 = vmatpush1.msra.mxu0 %v98
    %351 = vmatprep.subr.mxu0 0.0
    %352 = vmatpush1.msra.mxu0 %v99
    %353 = vmatprep.subr.mxu0 0.0
    %354 = vmatpush1.msra.mxu0 %v100
    %355 = vmatprep.subr.mxu0 0.0
    %356 = vmatpush1.msra.mxu0 %v101
    %357 = vmatprep.subr.mxu0 0.0
    %358 = vmatpush1.msra.mxu0 %v102
    %359 = vmatprep.subr.mxu0 0.0
    %360 = vmatpush1.msra.mxu0 %v103
    %361 = vmatprep.subr.mxu0 0.0
    %362 = vmatpush1.msra.mxu0 %v104
    %363 = vmatprep.subr.mxu0 0.0
    %364 = vmatpush1.msra.mxu0 %v105
    %365 = vmatprep.subr.mxu0 0.0
    %366 = vmatpush1.msra.mxu0 %v106
    %367 = vmatprep.subr.mxu0 0.0
    %368 = vmatpush1.msra.mxu0 %v107
    %369 = vmatprep.subr.mxu0 0.0
    %370 = vmatpush1.msra.mxu0 %v108
    %371 = vmatprep.subr.mxu0 0.0
    %372 = vmatpush1.msra.mxu0 %v109
    %373 = vmatprep.subr.mxu0 0.0
    %374 = vmatpush1.msra.mxu0 %v110
    %375 = vmatprep.subr.mxu0 0.0
    %376 = vmatpush1.msra.mxu0 %v111
    %377 = vmatprep.subr.mxu0 0.0
    %378 = vmatpush1.msra.mxu0 %v112
    %379 = vmatprep.subr.mxu0 0.0
    %380 = vmatpush1.msra.mxu0 %v113
    %381 = vmatprep.subr.mxu0 0.0
    %382 = vmatpush1.msra.mxu0 %v114
    %383 = vmatprep.subr.mxu0 0.0
    %384 = vmatpush1.msra.mxu0 %v115
    %385 = vmatprep.subr.mxu0 0.0
    %386 = vmatpush1.msra.mxu0 %v116
    %387 = vmatprep.subr.mxu0 0.0
    %388 = vmatpush1.msra.mxu0 %v117
    %389 = vmatprep.subr.mxu0 0.0
    %390 = vmatpush1.msra.mxu0 %v118
    %391 = vmatprep.subr.mxu0 0.0
    %392 = vmatpush1.msra.mxu0 %v119
    %393 = vmatprep.subr.mxu0 0.0
    %394 = vmatpush1.msra.mxu0 %v120
    %395 = vmatprep.subr.mxu0 0.0
    %396 = vmatpush1.msra.mxu0 %v121
    %397 = vmatprep.subr.mxu0 0.0
    %398 = vmatpush1.msra.mxu0 %v122
    %399 = vmatprep.subr.mxu0 0.0
    %400 = vmatpush1.msra.mxu0 %v123
    %401 = vmatprep.subr.mxu0 0.0
    %402 = vmatpush1.msra.mxu0 %v124
    %403 = vmatprep.subr.mxu0 0.0
    %404 = vmatpush1.msra.mxu0 %v125
    %405 = vmatprep.subr.mxu0 0.0
    %406 = vmatpush1.msra.mxu0 %v126
    %407 = vmatprep.mubr.f32.mxu0 %v193
    %408 = vmatmul.mubr.f32.gmra.mrb[0].mxu0 %v185
    %v409 = vpop.f32.mrb[0].mxu0
    %v410 = vadd.f32 %v340, %v409
    %v411 = vpop.f32.mrb[0].mxu0
    %412 = vdwg.mxu0
    %413 = vmatprep.subr.mxu0 0.0
    %414 = vmatpush1.msra.mxu0 %v127
    %415 = vmatprep.subr.mxu0 0.0
    %416 = vmatpush1.msra.mxu0 %v128
    %417 = vmatprep.subr.mxu0 0.0
    %418 = vmatpush1.msra.mxu0 %v129
    %419 = vmatprep.subr.mxu0 0.0
    %420 = vmatpush1.msra.mxu0 %v130
    %421 = vmatprep.subr.mxu0 0.0
    %422 = vmatpush1.msra.mxu0 %v131
    %423 = vmatprep.subr.mxu0 0.0
    %424 = vmatpush1.msra.mxu0 %v132
    %425 = vmatprep.subr.mxu0 0.0
    %426 = vmatpush1.msra.mxu0 %v133
    %427 = vmatprep.subr.mxu0 0.0
    %428 = vmatpush1.msra.mxu0 %v134
    %429 = vmatprep.subr.mxu0 0.0
    %430 = vmatpush1.msra.mxu0 %v135
    %431 = vmatprep.subr.mxu0 0.0
    %432 = vmatpush1.msra.mxu0 %v136
    %433 = vmatprep.subr.mxu0 0.0
    %434 = vmatpush1.msra.mxu0 %v137
    %435 = vmatprep.subr.mxu0 0.0
    %436 = vmatpush1.msra.mxu0 %v138
    %437 = vmatprep.subr.mxu0 0.0
    %438 = vmatpush1.msra.mxu0 %v139
    %439 = vmatprep.subr.mxu0 0.0
    %440 = vmatpush1.msra.mxu0 %v140
    %441 = vmatprep.subr.mxu0 0.0
    %442 = vmatpush1.msra.mxu0 %v141
    %443 = vmatprep.subr.mxu0 0.0
    %444 = vmatpush1.msra.mxu0 %v142
    %445 = vmatprep.subr.mxu0 0.0
    %446 = vmatpush1.msra.mxu0 %v143
    %447 = vmatprep.subr.mxu0 0.0
    %448 = vmatpush1.msra.mxu0 %v144
    %449 = vmatprep.subr.mxu0 0.0
    %450 = vmatpush1.msra.mxu0 %v145
    %451 = vmatprep.subr.mxu0 0.0
    %452 = vmatpush1.msra.mxu0 %v146
    %453 = vmatprep.subr.mxu0 0.0
    %454 = vmatpush1.msra.mxu0 %v147
    %455 = vmatprep.subr.mxu0 0.0
    %456 = vmatpush1.msra.mxu0 %v148
    %457 = vmatprep.subr.mxu0 0.0
    %458 = vmatpush1.msra.mxu0 %v149
    %459 = vmatprep.subr.mxu0 0.0
    %460 = vmatpush1.msra.mxu0 %v150
    %461 = vmatprep.subr.mxu0 0.0
    %462 = vmatpush1.msra.mxu0 %v151
    %463 = vmatprep.subr.mxu0 0.0
    %464 = vmatpush1.msra.mxu0 %v152
    %465 = vmatprep.subr.mxu0 0.0
    %466 = vmatpush1.msra.mxu0 %v153
    %467 = vmatprep.subr.mxu0 0.0
    %468 = vmatpush1.msra.mxu0 %v154
    %469 = vmatprep.subr.mxu0 0.0
    %470 = vmatpush1.msra.mxu0 %v155
    %471 = vmatprep.subr.mxu0 0.0
    %472 = vmatpush1.msra.mxu0 %v156
    %473 = vmatprep.subr.mxu0 0.0
    %474 = vmatpush1.msra.mxu0 %v157
    %475 = vmatprep.subr.mxu0 0.0
    %476 = vmatpush1.msra.mxu0 %v158
    %477 = vmatprep.mubr.f32.mxu0 %v194
    %478 = vmatmul.mubr.f32.gmra.mrb[0].mxu0 %v192
    %v479 = vpop.f32.mrb[0].mxu0
    %v480 = vadd.f32 %v410, %v479
    %v481 = vpop.f32.mrb[0].mxu0
    %482 = vdwg.mxu0
    %v483 = vadd.f32 %v28, %v480
    %vm484 = vcmask 254976
    %485 = vst.msk [vmem:[#allocation2] sm:$0x3] %vm484, %v483
    // Predicated region
    $region18: #{tpu_custom_call.1} parent=1 // pred_check
      _
    $region19: #{tpu_custom_call.1} parent=1 // pred_check_branch
      %487 = sbr.rel (0) target = $region21
    $region20: #{tpu_custom_call.1} parent=1 // pred_region
      %s489 = ssub.s32 32, 32
      %490 = vsyncadd [#allocation3], %s489
      %s492 = sshll.u32 [#allocation2], 4
      %s493 = int_to_ptr.vmem [resolvable:$true] %s492
      %495 = dma.vmem_to_hbm [thread:$0]  %s493, 32, %s3, [#allocation3]
    $region21: #{tpu_custom_call.1} parent=1 // pred_fallthru
      _
    // Predicated region
    $region22: #{tpu_custom_call.1} parent=1 // pred_check
      _
    $region23: #{tpu_custom_call.1} parent=1 // pred_check_branch
      %497 = sbr.rel (0) target = $region25
    $region24: #{tpu_custom_call.1} parent=1 // pred_region
      %498 = dma.done [#allocation3], 32
    $region25: #{tpu_custom_call.1} parent=1 // pred_fallthru
      _
    %499 = vsyncpa [#allocation3], 1

</llo_original>
